<compile_context>
chip_gen: v7x
topology: tpu7x:2x2x1
jax: 0.10.0
libtpu: 0.0.40
codegen_flags: <defaults>
</compile_context>

<pallas_src>
import jax
import jax.numpy as jnp
from jax.experimental import pallas as pl
from jax.experimental.pallas import tpu as pltpu


def _entmin_single_kernel(x_ref, o_ref):
    """Whole class dim in one tile: grid = (row_blocks,)."""
    x = x_ref[...].astype(jnp.float32)                       # (TB, C)
    m = jnp.max(x, axis=-1, keepdims=True)
    lse = m + jnp.log(jnp.sum(jnp.exp(x - m), axis=-1, keepdims=True))
    # sum(-x * log_softmax(x)) = lse * sum(x) - sum(x^2)
    o_ref[...] = (lse * jnp.sum(x, axis=-1, keepdims=True)
                  - jnp.sum(x * x, axis=-1, keepdims=True))


def _entmin_stream_kernel(x_ref, o_ref, m_ref, l_ref, sx_ref, sx2_ref):
    """Grid = (row_blocks, class_blocks); class axis is the reduction axis.

    Scratch (all (block_rows, 1) f32, carried across the class axis):
      m_ref   running max of logits per row
      l_ref   running sum(exp(x - m)) per row
      sx_ref  running sum(x) per row
      sx2_ref running sum(x*x) per row
    """
    j = pl.program_id(1)

    @pl.when(j == 0)
    def _init():
        m_ref[...] = jnp.full_like(m_ref, -jnp.inf)
        l_ref[...] = jnp.zeros_like(l_ref)
        sx_ref[...] = jnp.zeros_like(sx_ref)
        sx2_ref[...] = jnp.zeros_like(sx2_ref)

    x = x_ref[...].astype(jnp.float32)                       # (TB, TC)

    # Online logsumexp over the class axis.
    blk_max = jnp.max(x, axis=-1, keepdims=True)
    m_new = jnp.maximum(m_ref[...], blk_max)
    l_ref[...] = l_ref[...] * jnp.exp(m_ref[...] - m_new) + jnp.sum(
        jnp.exp(x - m_new), axis=-1, keepdims=True)
    m_ref[...] = m_new

    # Row moments needed by the folded loss formula.
    sx_ref[...] += jnp.sum(x, axis=-1, keepdims=True)
    sx2_ref[...] += jnp.sum(x * x, axis=-1, keepdims=True)

    @pl.when(j == pl.num_programs(1) - 1)
    def _finalize():
        lse = m_ref[...] + jnp.log(l_ref[...])               # logsumexp(x) per row
        o_ref[...] = lse * sx_ref[...] - sx2_ref[...]


def _tile_plan(B, C, elem):
    """Pick (block_rows, tc, n_class_blocks, vmem_capacity_or_None)."""
    # Per-input-buffer byte budget; the pipeline double-buffers it.
    tile_budget = 4 * 1024 * 1024
    vmem_cap = None
    try:
        vmem_cap = pltpu.get_tpu_info().vmem_capacity_bytes   # 64 MiB v7x, 128 MiB v5e/v6e
        tile_budget = int(min(8 * 1024 * 1024,
                              max(2 * 1024 * 1024, vmem_cap // 16)))
    except Exception:
        pass

    # ---- class-axis tile -------------------------------------------------
    if C * elem * 8 <= tile_budget:
        tc = C                                               # full class dim in one tile
    else:
        # Largest 128-multiple divisor of C such that >= 8 rows fit the budget.
        tc = None
        max_tc = max(128, (tile_budget // (8 * elem)) // 128 * 128)
        cand = min(max_tc, (C // 128) * 128)
        while cand >= 128:
            if C % cand == 0:
                tc = cand
                break
            cand -= 128
        if tc is None:
            # TODO(synk): masked ragged class tiling (partial last C block) not
            # implemented; fall back to full-C tiles (small row tiles for huge C).
            tc = C
    n_cb = C // tc

    # ---- row-axis tile: fill the byte budget, multiple of 8 ---------------
    block_rows = tile_budget // (tc * elem)
    block_rows = max(8, (block_rows // 8) * 8)
    block_rows = min(block_rows, ((B + 7) // 8) * 8)
    return block_rows, tc, n_cb, vmem_cap


def entmin(logits, reduction="mean"):
    """EntMin loss; activation=None. reduction in {'mean','sum','none'}."""
    assert reduction in ("mean", "sum", "none")
    *lead, C = logits.shape
    B = 1
    for d in lead:
        B *= d
    x2 = logits.reshape(B, C)                                # pure view, keep dtype
    elem = x2.dtype.itemsize

    block_rows, tc, n_cb, vmem_cap = _tile_plan(B, C, elem)
    n_rb = pl.cdiv(B, block_rows)                            # ragged last block OK

    # ---- VMEM limit --------------------------------------------------------
    in_tile = block_rows * tc * elem
    out_tile = block_rows * 4
    scratch_bytes = 0 if n_cb == 1 else 4 * block_rows * 4
    vmem_need = 2 * in_tile + 2 * out_tile + scratch_bytes + (4 << 20)
    hard_cap = (64 << 20) if vmem_cap is None else max(32 << 20, vmem_cap - (16 << 20))
    vmem_limit = int(min(hard_cap, max(32 << 20, vmem_need)))

    if n_cb == 1:
        per_row = pl.pallas_call(
            _entmin_single_kernel,
            out_shape=jax.ShapeDtypeStruct((B, 1), jnp.float32),
            grid_spec=pltpu.PrefetchScalarGridSpec(
                num_scalar_prefetch=0,
                grid=(n_rb,),
                in_specs=[pl.BlockSpec((block_rows, C), lambda i: (i, 0))],
                out_specs=pl.BlockSpec((block_rows, 1), lambda i: (i, 0)),
            ),
            compiler_params=pltpu.CompilerParams(
                dimension_semantics=("parallel",),
                vmem_limit_bytes=vmem_limit,
            ),
        )(x2)
    else:
        per_row = pl.pallas_call(
            _entmin_stream_kernel,
            out_shape=jax.ShapeDtypeStruct((B, 1), jnp.float32),
            grid_spec=pltpu.PrefetchScalarGridSpec(
                num_scalar_prefetch=0,
                grid=(n_rb, n_cb),
                in_specs=[pl.BlockSpec((block_rows, tc), lambda i, j: (i, j))],
                out_specs=pl.BlockSpec((block_rows, 1), lambda i, j: (i, 0)),
                scratch_shapes=[pltpu.VMEM((block_rows, 1), jnp.float32)] * 4,
            ),
            compiler_params=pltpu.CompilerParams(
                dimension_semantics=("parallel", "arbitrary"),
                vmem_limit_bytes=vmem_limit,
            ),
        )(x2)

    per_row = per_row[:B, 0]                                 # drop ragged-block garbage rows
    if reduction == "none":
        return per_row.reshape(tuple(lead))
    total = jnp.sum(per_row)
    if reduction == "mean":
        return total / jnp.float32(B)
    return total


def _entmin_ref(logits, reduction="mean"):
    x = logits.astype(jnp.float32)
    log_pred = jax.nn.log_softmax(x, axis=-1)
    loss = jnp.sum(-x * log_pred, axis=-1)
    if reduction == "mean":
        return jnp.mean(loss)
    if reduction == "sum":
        return jnp.sum(loss)
    return loss


if __name__ == "__main__":
    key = jax.random.PRNGKey(0)
    # Small shape consistent with the module's forward: (batch..., num_classes)
    logits = jax.random.normal(key, (2, 4, 32), dtype=jnp.float32)

    out = entmin(logits, reduction="mean")
    out = jax.block_until_ready(out)
    ref = _entmin_ref(logits, reduction="mean")
    assert jnp.allclose(out, ref, rtol=1e-5, atol=1e-4), (out, ref)

    out_none = jax.block_until_ready(entmin(logits, reduction="none"))
    ref_none = _entmin_ref(logits, reduction="none").reshape(2, 4)
    assert jnp.allclose(out_none, ref_none, rtol=1e-5, atol=1e-4)

    print("KERNEL_OK")
</pallas_src>

<mosaic_0001>
module attributes {stable_mosaic.version = 11 : i64} {
  func.func @_entmin_single_kernel(%arg0: i32, %arg1: memref<8x32xf32, #tpu.memory_space<vmem>>, %arg2: memref<8x1xf32, #tpu.memory_space<vmem>>) attributes {dimension_semantics = [#tpu.dimension_semantics<parallel>], iteration_bounds = array<i64: 1>, scalar_prefetch = 0 : i64, scratch_operands = 0 : i64, tpu.core_type = #tpu.core_type<tc>, window_params = [{transform_indices = @transform_0, window_bounds = array<i64: 8, 32>}, {transform_indices = @transform_1, window_bounds = array<i64: 8, 1>}]} {
    %c0 = arith.constant 0 : index
    %c0_0 = arith.constant 0 : index
    %0 = vector.load %arg1[%c0, %c0_0] : memref<8x32xf32, #tpu.memory_space<vmem>>, vector<8x32xf32>
    %cst = arith.constant dense<0xFF800000> : vector<8xf32>
    %1 = vector.multi_reduction <maximumf>, %0, %cst [1] : vector<8x32xf32> to vector<8xf32>
    %2 = vector.shape_cast %1 : vector<8xf32> to vector<8x1xf32>
    %3 = vector.broadcast %2 : vector<8x1xf32> to vector<8x32xf32>
    %4 = arith.subf %0, %3 : vector<8x32xf32>
    %5 = math.exp %4 : vector<8x32xf32>
    %cst_1 = arith.constant dense<0.000000e+00> : vector<8xf32>
    %6 = vector.multi_reduction <add>, %5, %cst_1 [1] : vector<8x32xf32> to vector<8xf32>
    %7 = vector.shape_cast %6 : vector<8xf32> to vector<8x1xf32>
    %8 = math.log %7 : vector<8x1xf32>
    %9 = arith.addf %2, %8 : vector<8x1xf32>
    %cst_2 = arith.constant dense<0.000000e+00> : vector<8xf32>
    %10 = vector.multi_reduction <add>, %0, %cst_2 [1] : vector<8x32xf32> to vector<8xf32>
    %11 = vector.shape_cast %10 : vector<8xf32> to vector<8x1xf32>
    %12 = arith.mulf %9, %11 : vector<8x1xf32>
    %13 = arith.mulf %0, %0 : vector<8x32xf32>
    %cst_3 = arith.constant dense<0.000000e+00> : vector<8xf32>
    %14 = vector.multi_reduction <add>, %13, %cst_3 [1] : vector<8x32xf32> to vector<8xf32>
    %15 = vector.shape_cast %14 : vector<8xf32> to vector<8x1xf32>
    %16 = arith.subf %12, %15 : vector<8x1xf32>
    %c0_4 = arith.constant 0 : index
    %c0_5 = arith.constant 0 : index
    %17 = vector.load %arg2[%c0_4, %c0_5] : memref<8x1xf32, #tpu.memory_space<vmem>>, vector<8x1xf32>
    tpu.vector_store %arg2[%c0_4, %c0_5], %16 {strides = array<i32>} : memref<8x1xf32, #tpu.memory_space<vmem>>, vector<8x1xf32>,
    return
  }
  func.func @transform_0(%arg0: i32) -> (i32, i32) {
    %c0_i32 = arith.constant 0 : i32
    %c0_i32_0 = arith.constant 0 : i32
    return %arg0, %c0_i32 : i32, i32
  }
  func.func @transform_1(%arg0: i32) -> (i32, i32) {
    %c0_i32 = arith.constant 0 : i32
    %c0_i32_0 = arith.constant 0 : i32
    return %arg0, %c0_i32 : i32, i32
  }
}

</mosaic_0001>

<llo_original>
// kernel: tpu_custom_call.1
$region0: #{tpu_custom_call.1}
  #allocation0 [shape = 'u32[]', space=smem, size = 0x4, offset = 0x4, fixed_abs, tag = 'smem constant byte address 0x4 - core index']
  #allocation1 [shape = 'u32[144,128]{1,0:T(1,128)}', space=vmem, size = 0x12000, scoped, tag = 'internal scratch']
  %s0 = inlined_call_operand.hbm [shape: f32[8,32], index: 0, kind: input, shape index: {}]
  %s1 = inlined_call_operand.vmem [shape: f32[8,1], index: 1, kind: output, shape index: {}]
  %s2 = sld [smem:[#allocation0]]
  $region18: #{tpu_custom_call.1} parent=0
    _
  %s4 = ssub.s32 1, %s2
  %s5 = scalar_select 0, %s4, %s2
  $region1: #{tpu_custom_call.1} parent=0
    #allocation2 [shape = 'u8[4096]{0}', space=vmem, size = 0x1000, scoped, tag = 'input window, operand 0, single buffered']
    #allocation3 [shape = 's32[1]{0}', space=sflag, size = 0x4, scoped, tag = 'scoped memory for tpu_custom_call.1']
    %6 = vsyncpa [#allocation3], 0
    // Predicated region
    $region2: #{tpu_custom_call.1} parent=1 // pred_check
      _
    $region3: #{tpu_custom_call.1} parent=1 // pred_check_branch
      %8 = sbr.rel (0) target = $region5
    $region4: #{tpu_custom_call.1} parent=1 // pred_region
      %s10 = ssub.s32 128, 128
      %11 = vsyncadd [#allocation3], %s10
      %s13 = sshll.u32 [#allocation2], 4
      %s14 = int_to_ptr.vmem [resolvable:$true] %s13
      %16 = dma.hbm_to_vmem [thread:$0]  %s0, 128, %s14, [#allocation3]
    $region5: #{tpu_custom_call.1} parent=1 // pred_fallthru
      _
    // Predicated region
    $region6: #{tpu_custom_call.1} parent=1 // pred_check
      _
    $region7: #{tpu_custom_call.1} parent=1 // pred_check_branch
      %18 = sbr.rel (0) target = $region9
    $region8: #{tpu_custom_call.1} parent=1 // pred_region
      %19 = dma.done [#allocation3], 128
    $region9: #{tpu_custom_call.1} parent=1 // pred_fallthru
      _
    %v20 = vld [vmem:[#allocation2] sm:$0xff]
    %vm21 = vcmask 261120
    %v22 = vsel %vm21, %v20, -inf
    %23 = vmax.xlane.f32.xlu0 %v22
    %v24 = vpop.xlane.xlu0 %23
    %v25 = vsub.f32 %v20, %v24
    %v26 = vmul.f32 %v25, 1.442695
    %v27 = vpow.pop %v26
    %v28 = vsel %vm21, %v27, 0.0
    %29 = vadd.xlane.f32.xlu0 %v28
    %v30 = vpop.xlane.xlu0 %29
    %v31 = vlog2.pop %v30
    %v32 = vmul.f32 %v31, 0.6931472
    %v33 = vadd.f32 %v24, %v32
    %v34 = vsel %vm21, %v20, 0.0
    %35 = vadd.xlane.f32.xlu0 %v34
    %v36 = vpop.xlane.xlu0 %35
    %v37 = vmul.f32 %v33, %v36
    %v38 = vmul.f32 %v20, %v20
    %v39 = vsel %vm21, %v38, 0.0
    %40 = vadd.xlane.f32.xlu0 %v39
    %v41 = vpop.xlane.xlu0 %40
    %v42 = vsub.f32 %v37, %v41
    %vm43 = vcmask 7168
    %44 = vst.msk [vmem:[%s1] sm:$0xff] %vm43, %v42
    // Predicated region
    $region10: #{tpu_custom_call.1} parent=1 // pred_check
      _
    $region11: #{tpu_custom_call.1} parent=1 // pred_check_branch
      %46 = sbr.rel (0) target = $region13
    $region12: #{tpu_custom_call.1} parent=1 // pred_region
      _
    $region13: #{tpu_custom_call.1} parent=1 // pred_fallthru
      _
    // Predicated region
    $region14: #{tpu_custom_call.1} parent=1 // pred_check
      _
    $region15: #{tpu_custom_call.1} parent=1 // pred_check_branch
      %48 = sbr.rel (0) target = $region17
    $region16: #{tpu_custom_call.1} parent=1 // pred_region
      _
    $region17: #{tpu_custom_call.1} parent=1 // pred_fallthru
      _
    %49 = vsyncpa [#allocation3], 1

</llo_original>
